<compile_context>
chip_gen: v6e
topology: v6e:2x2x1
jax: 0.10.0
libtpu: 0.0.40
codegen_flags: <defaults>
</compile_context>

<pallas_src>
import jax
import jax.numpy as jnp
from jax.experimental import pallas as pl
from jax.experimental.pallas import tpu as pltpu


# ------------------------------- kernels -----------------------------------


def _tap_stack(h):
    """h: (C, L) -> (3*C, L): row blocks [h[:, m-1], h[:, m], h[:, m+1]] (zero-padded)."""
    c, l = h.shape
    z = jnp.zeros((c, 1), h.dtype)
    left = jnp.concatenate([z, h[:, : l - 1]], axis=1)   # x[m-1], zero at m=0
    right = jnp.concatenate([h[:, 1:], z], axis=1)       # x[m+1], zero at m=L-1
    return jnp.concatenate([left, h, right], axis=0)


def _conv_block(h, w, y_ref, stats_ref):
    """Per-sample conv matmuls over a (nb, C, L) block; write conv output + BN partials."""
    nb = h.shape[0]
    for i in range(nb):                                   # nb is small & static (unrolled)
        h3 = _tap_stack(h[i])                             # (3*Cin, L)
        y = jnp.dot(w, h3, preferred_element_type=jnp.float32)   # (Cout, L) on the MXU
        y_ref[i] = y.astype(y_ref.dtype)
        s = jnp.sum(y, axis=1, keepdims=True)
        sq = jnp.sum(y * y, axis=1, keepdims=True)
        stats_ref[i] = jnp.concatenate([s, sq], axis=1)   # (Cout, 2)


def _conv_stats_kernel(x_ref, w_ref, y_ref, stats_ref):
    """y = conv3(x) (bias folded away by train-mode BN); emit per-channel (sum, sumsq)."""
    _conv_block(x_ref[...], w_ref[...], y_ref, stats_ref)


def _bnrelu_conv_stats_kernel(y_ref, scale_ref, shift_ref, w_ref, y2_ref, stats_ref):
    """h = relu(scale*y + shift); y2 = conv3(h); emit (sum, sumsq) of y2."""
    scale = scale_ref[...][None]                          # (1, C, 1) broadcast over block
    shift = shift_ref[...][None]
    h = jnp.maximum(y_ref[...] * scale + shift, 0.0)      # (nb, C, L)
    _conv_block(h, w_ref[...], y2_ref, stats_ref)


def _bnrelu_kernel(y_ref, scale_ref, shift_ref, out_ref):
    out_ref[...] = jnp.maximum(
        y_ref[...] * scale_ref[...][None] + shift_ref[...][None], 0.0
    ).astype(out_ref.dtype)


# ------------------------------- wrapper ------------------------------------


def _round_up(x, m):
    return (x + m - 1) // m * m


def _pad_to(a, axis, size):
    pad = size - a.shape[axis]
    if pad == 0:
        return a
    widths = [(0, 0)] * a.ndim
    widths[axis] = (0, pad)
    return jnp.pad(a, widths)


def _pick_batch_block(n, per_sample_bytes, *, max_unroll=8, budget_bytes=4 << 20):
    """Largest divisor of n that fits the VMEM budget and the unroll cap."""
    nb = min(n, max_unroll, max(1, budget_bytes // max(per_sample_bytes, 1)))
    while n % nb:
        nb -= 1
    return nb


def _scale_shift(stats, gamma, beta, count, eps):
    """stats: (N, C, 2) per-sample (sum, sumsq) -> per-channel (scale, shift) columns."""
    s = jnp.sum(stats[..., 0], axis=0)
    sq = jnp.sum(stats[..., 1], axis=0)
    mean = s / count
    var = jnp.maximum(sq / count - mean * mean, 0.0)       # biased var (BN train mode)
    scale = gamma * jax.lax.rsqrt(var + eps)
    shift = beta - scale * mean
    return scale.reshape(-1, 1), shift.reshape(-1, 1)


def double_block(x, params, *, eps=1e-5):
    """x: (N, Cin, L) float32; params: (w1, b1, g1, be1, w2, b2, g2, be2).

    Conv biases b1/b2 are accepted but unused: a per-channel constant added
    right before train-mode BatchNorm is exactly cancelled by mean subtraction.
    """
    n, cin, l = x.shape
    w1, _b1, g1, be1, w2, _b2, g2, be2 = params
    cout = w1.shape[0]
    dtype = x.dtype
    f32 = jnp.float32

    # Channel padding to the sublane tile (8); padded channels stay exactly zero.
    cin_p = _round_up(cin, 8)
    cout_p = _round_up(cout, 8)

    x_p = _pad_to(x, 1, cin_p)
    w1_p = _pad_to(_pad_to(w1, 0, cout_p), 1, cin_p)       # (Cout_p, Cin_p, 3)
    w2_p = _pad_to(_pad_to(w2, 0, cout_p), 1, cout_p)      # (Cout_p, Cout_p, 3)
    # Flatten taps: each conv is a single (Cout_p, 3*Cin_p) @ (3*Cin_p, L) matmul.
    # Column order is (k, i) = tap-major, matching _tap_stack's row blocks.
    w1_f = jnp.transpose(w1_p, (0, 2, 1)).reshape(cout_p, 3 * cin_p).astype(dtype)
    w2_f = jnp.transpose(w2_p, (0, 2, 1)).reshape(cout_p, 3 * cout_p).astype(dtype)
    g1_p, be1_p = _pad_to(g1, 0, cout_p), _pad_to(be1, 0, cout_p)
    g2_p, be2_p = _pad_to(g2, 0, cout_p), _pad_to(be2, 0, cout_p)

    # Batch blocking: several samples per grid step (fewer steps, bigger DMAs).
    per_sample_bytes = 4 * l * (cin_p + 3 * cout_p)        # x tile + conv out + stats-ish
    nb = _pick_batch_block(n, per_sample_bytes)
    grid = (n // nb,)

    parallel = pltpu.CompilerParams(dimension_semantics=("parallel",))

    def block_spec(c):
        return pl.BlockSpec((nb, c, l), lambda i: (i, 0, 0))

    def full_spec(shape):
        nd = len(shape)
        return pl.BlockSpec(shape, lambda i, nd=nd: (0,) * nd)

    stats_spec = pl.BlockSpec((nb, cout_p, 2), lambda i: (i, 0, 0))

    # ---- layer 1: conv + per-sample BN partial stats -----------------------
    y1, st1 = pl.pallas_call(
        _conv_stats_kernel,
        grid=grid,
        in_specs=[block_spec(cin_p), full_spec(w1_f.shape)],
        out_specs=(block_spec(cout_p), stats_spec),
        out_shape=(jax.ShapeDtypeStruct((n, cout_p, l), f32),
                   jax.ShapeDtypeStruct((n, cout_p, 2), f32)),
        compiler_params=parallel,
    )(x_p, w1_f)

    sc1, sh1 = _scale_shift(st1, g1_p, be1_p, n * l, eps)  # tiny (C,) glue in plain JAX

    # ---- layer 1 BN+ReLU fused with layer 2 conv + its BN partial stats ----
    y2, st2 = pl.pallas_call(
        _bnrelu_conv_stats_kernel,
        grid=grid,
        in_specs=[block_spec(cout_p), full_spec(sc1.shape),
                  full_spec(sh1.shape), full_spec(w2_f.shape)],
        out_specs=(block_spec(cout_p), stats_spec),
        out_shape=(jax.ShapeDtypeStruct((n, cout_p, l), f32),
                   jax.ShapeDtypeStruct((n, cout_p, 2), f32)),
        compiler_params=parallel,
    )(y1, sc1, sh1, w2_f)

    sc2, sh2 = _scale_shift(st2, g2_p, be2_p, n * l, eps)

    # ---- layer 2 BN + ReLU --------------------------------------------------
    out = pl.pallas_call(
        _bnrelu_kernel,
        grid=grid,
        in_specs=[block_spec(cout_p), full_spec(sc2.shape), full_spec(sh2.shape)],
        out_specs=block_spec(cout_p),
        out_shape=jax.ShapeDtypeStruct((n, cout_p, l), dtype),
        compiler_params=parallel,
    )(y2, sc2, sh2)

    return out[:, :cout, :]


# ------------------------------ reference -----------------------------------


def _reference(x, params, eps=1e-5):
    """Plain-JAX reference with the PyTorch module's semantics (validation only)."""
    w1, b1, g1, be1, w2, b2, g2, be2 = params

    def conv(h, w, b):
        hp = jnp.pad(h, ((0, 0), (0, 0), (1, 1)))
        y = jnp.zeros((h.shape[0], w.shape[0], h.shape[2]), jnp.float32)
        for k in range(3):
            y = y + jnp.einsum('oi,nil->nol', w[:, :, k], hp[:, :, k:k + h.shape[2]])
        return y + b[None, :, None]

    def bn_relu(y, g, be):
        mu = jnp.mean(y, axis=(0, 2), keepdims=True)
        var = jnp.mean((y - mu) ** 2, axis=(0, 2), keepdims=True)
        yh = (y - mu) * jax.lax.rsqrt(var + eps)
        return jnp.maximum(g[None, :, None] * yh + be[None, :, None], 0.0)

    h = bn_relu(conv(x, w1, b1), g1, be1)
    return bn_relu(conv(h, w2, b2), g2, be2)


if __name__ == "__main__":
    N, CIN, COUT, L = 2, 4, 8, 16

    key = jax.random.PRNGKey(0)
    k1, k2, k3, k4, kx = jax.random.split(key, 5)

    # Deterministic init mirroring PyTorch defaults (uniform +-1/sqrt(fan_in),
    # BN gamma=1, beta=0).
    bound1 = 1.0 / (CIN * 3) ** 0.5
    bound2 = 1.0 / (COUT * 3) ** 0.5
    w1 = jax.random.uniform(k1, (COUT, CIN, 3), jnp.float32, -bound1, bound1)
    b1 = jax.random.uniform(k2, (COUT,), jnp.float32, -bound1, bound1)
    w2 = jax.random.uniform(k3, (COUT, COUT, 3), jnp.float32, -bound2, bound2)
    b2 = jax.random.uniform(k4, (COUT,), jnp.float32, -bound2, bound2)
    g1 = jnp.ones((COUT,), jnp.float32)
    be1 = jnp.zeros((COUT,), jnp.float32)
    g2 = jnp.ones((COUT,), jnp.float32)
    be2 = jnp.zeros((COUT,), jnp.float32)
    params = (w1, b1, g1, be1, w2, b2, g2, be2)

    x = jax.random.normal(kx, (N, CIN, L), jnp.float32)

    out = double_block(x, params)
    out = jax.block_until_ready(out)

    ref = _reference(x, params)
    assert out.shape == (N, COUT, L), out.shape
    assert jnp.allclose(out, ref, atol=2e-4, rtol=2e-4), \
        float(jnp.max(jnp.abs(out - ref)))

    print("KERNEL_OK")
</pallas_src>

<mosaic_0001>
module attributes {stable_mosaic.version = 11 : i64} {
  func.func @_conv_stats_kernel(%arg0: i32, %arg1: memref<2x8x16xf32, #tpu.memory_space<vmem>>, %arg2: memref<8x24xf32, #tpu.memory_space<vmem>>, %arg3: memref<2x8x16xf32, #tpu.memory_space<vmem>>, %arg4: memref<2x8x2xf32, #tpu.memory_space<vmem>>) attributes {dimension_semantics = [#tpu.dimension_semantics<parallel>], iteration_bounds = array<i64: 1>, scalar_prefetch = 0 : i64, scratch_operands = 0 : i64, tpu.core_type = #tpu.core_type<tc>, window_params = [{transform_indices = @transform_0, window_bounds = array<i64: 2, 8, 16>}, {pipeline_mode = #tpu.pipeline_mode<synchronous>, transform_indices = @transform_1, window_bounds = array<i64: 8, 24>}, {transform_indices = @transform_2, window_bounds = array<i64: 2, 8, 16>}, {transform_indices = @transform_3, window_bounds = array<i64: 2, 8, 2>}]} {
    %c0 = arith.constant 0 : index
    %c0_0 = arith.constant 0 : index
    %c0_1 = arith.constant 0 : index
    %0 = vector.load %arg1[%c0, %c0_0, %c0_1] : memref<2x8x16xf32, #tpu.memory_space<vmem>>, vector<2x8x16xf32>
    %c0_2 = arith.constant 0 : index
    %c0_3 = arith.constant 0 : index
    %1 = vector.load %arg2[%c0_2, %c0_3] : memref<8x24xf32, #tpu.memory_space<vmem>>, vector<8x24xf32>
    %2 = vector.extract_strided_slice %0 {offsets = [0, 0, 0], sizes = [1, 8, 16], strides = [1, 1, 1]} : vector<2x8x16xf32> to vector<1x8x16xf32>
    %3 = vector.shape_cast %2 : vector<1x8x16xf32> to vector<8x16xf32>
    %cst = arith.constant 0.000000e+00 : f32
    %4 = vector.broadcast %cst : f32 to vector<8x1xf32>
    %5 = vector.extract_strided_slice %3 {offsets = [0, 0], sizes = [8, 15], strides = [1, 1]} : vector<8x16xf32> to vector<8x15xf32>
    %6 = tpu.concatenate %4, %5 in 1 : vector<8x1xf32>, vector<8x15xf32> -> vector<8x16xf32>
    %7 = vector.extract_strided_slice %3 {offsets = [0, 1], sizes = [8, 15], strides = [1, 1]} : vector<8x16xf32> to vector<8x15xf32>
    %8 = tpu.concatenate %7, %4 in 1 : vector<8x15xf32>, vector<8x1xf32> -> vector<8x16xf32>
    %9 = tpu.concatenate %6, %3, %8 in 0 : vector<8x16xf32>, vector<8x16xf32>, vector<8x16xf32> -> vector<24x16xf32>
    %cst_4 = arith.constant dense<0.000000e+00> : vector<8x16xf32>
    %10 = tpu.matmul %1, %9, %cst_4 {dimension_numbers = #tpu.dot_dimension_numbers<[1], [0], [0], [1], [0, 0, 1, 1], [], []>} : vector<8x24xf32>, vector<24x16xf32>, vector<8x16xf32> -> vector<8x16xf32>
    %c0_5 = arith.constant 0 : index
    %c0_6 = arith.constant 0 : index
    %c0_7 = arith.constant 0 : index
    %11 = vector.load %arg3[%c0_5, %c0_6, %c0_7] : memref<2x8x16xf32, #tpu.memory_space<vmem>>, vector<1x8x16xf32>
    %12 = vector.shape_cast %11 : vector<1x8x16xf32> to vector<8x16xf32>
    %13 = vector.shape_cast %10 : vector<8x16xf32> to vector<1x8x16xf32>
    tpu.vector_store %arg3[%c0_5, %c0_6, %c0_7], %13 {strides = array<i32>} : memref<2x8x16xf32, #tpu.memory_space<vmem>>, vector<1x8x16xf32>,
    %cst_8 = arith.constant dense<0.000000e+00> : vector<8xf32>
    %14 = vector.multi_reduction <add>, %10, %cst_8 [1] : vector<8x16xf32> to vector<8xf32>
    %15 = vector.shape_cast %14 : vector<8xf32> to vector<8x1xf32>
    %16 = arith.mulf %10, %10 : vector<8x16xf32>
    %cst_9 = arith.constant dense<0.000000e+00> : vector<8xf32>
    %17 = vector.multi_reduction <add>, %16, %cst_9 [1] : vector<8x16xf32> to vector<8xf32>
    %18 = vector.shape_cast %17 : vector<8xf32> to vector<8x1xf32>
    %19 = tpu.concatenate %15, %18 in 1 : vector<8x1xf32>, vector<8x1xf32> -> vector<8x2xf32>
    %c0_10 = arith.constant 0 : index
    %c0_11 = arith.constant 0 : index
    %c0_12 = arith.constant 0 : index
    %20 = vector.load %arg4[%c0_10, %c0_11, %c0_12] : memref<2x8x2xf32, #tpu.memory_space<vmem>>, vector<1x8x2xf32>
    %21 = vector.shape_cast %20 : vector<1x8x2xf32> to vector<8x2xf32>
    %22 = vector.shape_cast %19 : vector<8x2xf32> to vector<1x8x2xf32>
    tpu.vector_store %arg4[%c0_10, %c0_11, %c0_12], %22 {strides = array<i32>} : memref<2x8x2xf32, #tpu.memory_space<vmem>>, vector<1x8x2xf32>,
    %23 = vector.extract_strided_slice %0 {offsets = [1, 0, 0], sizes = [1, 8, 16], strides = [1, 1, 1]} : vector<2x8x16xf32> to vector<1x8x16xf32>
    %24 = vector.shape_cast %23 : vector<1x8x16xf32> to vector<8x16xf32>
    %cst_13 = arith.constant 0.000000e+00 : f32
    %25 = vector.broadcast %cst_13 : f32 to vector<8x1xf32>
    %26 = vector.extract_strided_slice %24 {offsets = [0, 0], sizes = [8, 15], strides = [1, 1]} : vector<8x16xf32> to vector<8x15xf32>
    %27 = tpu.concatenate %25, %26 in 1 : vector<8x1xf32>, vector<8x15xf32> -> vector<8x16xf32>
    %28 = vector.extract_strided_slice %24 {offsets = [0, 1], sizes = [8, 15], strides = [1, 1]} : vector<8x16xf32> to vector<8x15xf32>
    %29 = tpu.concatenate %28, %25 in 1 : vector<8x15xf32>, vector<8x1xf32> -> vector<8x16xf32>
    %30 = tpu.concatenate %27, %24, %29 in 0 : vector<8x16xf32>, vector<8x16xf32>, vector<8x16xf32> -> vector<24x16xf32>
    %cst_14 = arith.constant dense<0.000000e+00> : vector<8x16xf32>
    %31 = tpu.matmul %1, %30, %cst_14 {dimension_numbers = #tpu.dot_dimension_numbers<[1], [0], [0], [1], [0, 0, 1, 1], [], []>} : vector<8x24xf32>, vector<24x16xf32>, vector<8x16xf32> -> vector<8x16xf32>
    %c1 = arith.constant 1 : index
    %c0_15 = arith.constant 0 : index
    %c0_16 = arith.constant 0 : index
    %32 = vector.load %arg3[%c1, %c0_15, %c0_16] : memref<2x8x16xf32, #tpu.memory_space<vmem>>, vector<1x8x16xf32>
    %33 = vector.shape_cast %32 : vector<1x8x16xf32> to vector<8x16xf32>
    %34 = vector.shape_cast %31 : vector<8x16xf32> to vector<1x8x16xf32>
    tpu.vector_store %arg3[%c1, %c0_15, %c0_16], %34 {strides = array<i32>} : memref<2x8x16xf32, #tpu.memory_space<vmem>>, vector<1x8x16xf32>,
    %cst_17 = arith.constant dense<0.000000e+00> : vector<8xf32>
    %35 = vector.multi_reduction <add>, %31, %cst_17 [1] : vector<8x16xf32> to vector<8xf32>
    %36 = vector.shape_cast %35 : vector<8xf32> to vector<8x1xf32>
    %37 = arith.mulf %31, %31 : vector<8x16xf32>
    %cst_18 = arith.constant dense<0.000000e+00> : vector<8xf32>
    %38 = vector.multi_reduction <add>, %37, %cst_18 [1] : vector<8x16xf32> to vector<8xf32>
    %39 = vector.shape_cast %38 : vector<8xf32> to vector<8x1xf32>
    %40 = tpu.concatenate %36, %39 in 1 : vector<8x1xf32>, vector<8x1xf32> -> vector<8x2xf32>
    %c1_19 = arith.constant 1 : index
    %c0_20 = arith.constant 0 : index
    %c0_21 = arith.constant 0 : index
    %41 = vector.load %arg4[%c1_19, %c0_20, %c0_21] : memref<2x8x2xf32, #tpu.memory_space<vmem>>, vector<1x8x2xf32>
    %42 = vector.shape_cast %41 : vector<1x8x2xf32> to vector<8x2xf32>
    %43 = vector.shape_cast %40 : vector<8x2xf32> to vector<1x8x2xf32>
    tpu.vector_store %arg4[%c1_19, %c0_20, %c0_21], %43 {strides = array<i32>} : memref<2x8x2xf32, #tpu.memory_space<vmem>>, vector<1x8x2xf32>,
    return
  }
  func.func @transform_0(%arg0: i32) -> (i32, i32, i32) {
    %c0_i32 = arith.constant 0 : i32
    %c0_i32_0 = arith.constant 0 : i32
    %c0_i32_1 = arith.constant 0 : i32
    return %arg0, %c0_i32, %c0_i32_0 : i32, i32, i32
  }
  func.func @transform_1(%arg0: i32) -> (i32, i32) {
    %c0_i32 = arith.constant 0 : i32
    %c0_i32_0 = arith.constant 0 : i32
    %c0_i32_1 = arith.constant 0 : i32
    return %c0_i32, %c0_i32_0 : i32, i32
  }
  func.func @transform_2(%arg0: i32) -> (i32, i32, i32) {
    %c0_i32 = arith.constant 0 : i32
    %c0_i32_0 = arith.constant 0 : i32
    %c0_i32_1 = arith.constant 0 : i32
    return %arg0, %c0_i32, %c0_i32_0 : i32, i32, i32
  }
  func.func @transform_3(%arg0: i32) -> (i32, i32, i32) {
    %c0_i32 = arith.constant 0 : i32
    %c0_i32_0 = arith.constant 0 : i32
    %c0_i32_1 = arith.constant 0 : i32
    return %arg0, %c0_i32, %c0_i32_0 : i32, i32, i32
  }
}

</mosaic_0001>

<llo_original>
// kernel: tpu_custom_call.1
$region0: #{tpu_custom_call.1}
  #allocation0 [shape = 'u32[]', space=smem, size = 0x4, offset = 0x4, fixed_abs, tag = 'smem constant byte address 0x4 - core index']
  #allocation1 [shape = 'u32[144,128]{1,0:T(1,128)}', space=vmem, size = 0x12000, scoped, tag = 'internal scratch']
  %s0 = inlined_call_operand.hbm [shape: f32[2,8,16], index: 0, kind: input, shape index: {}]
  %s1 = inlined_call_operand.hbm [shape: f32[8,24], index: 1, kind: input, shape index: {}]
  %s2 = inlined_call_operand.hbm [shape: f32[2,8,16], index: 2, kind: output, shape index: {0}]
  %s3 = inlined_call_operand.vmem [shape: f32[2,8,2], index: 3, kind: output, shape index: {1}]
  %4 = xla_tuple %s2, %s3
  %s5 = sld [smem:[#allocation0]]
  $region34: #{tpu_custom_call.1} parent=0
    _
  %s7 = ssub.s32 1, %s5
  %s8 = scalar_select 0, %s7, %s5
  $region1: #{tpu_custom_call.1} parent=0
    #allocation2 [shape = 'u8[8192]{0}', space=vmem, size = 0x2000, scoped, tag = 'input window, operand 0, single buffered']
    #allocation3 [shape = 's32[1]{0}', space=sflag, size = 0x4, scoped, tag = 'scoped memory for tpu_custom_call.1']
    #allocation4 [shape = 's32[1]{0}', space=sflag, size = 0x4, scoped, tag = 'scoped memory for tpu_custom_call.1']
    #allocation5 [shape = 'u8[4096]{0}', space=vmem, size = 0x1000, scoped, tag = 'input window, operand 1, single buffered']
    #allocation6 [shape = 's32[1]{0}', space=sflag, size = 0x4, scoped, tag = 'scoped memory for tpu_custom_call.1']
    #allocation7 [shape = 'u8[8192]{0}', space=vmem, size = 0x2000, scoped, tag = 'output window, operand 0, single buffered']
    %9 = vsyncpa [#allocation3], 0
    %10 = vsyncpa [#allocation6], 0
    %11 = vsyncpa [#allocation4], 0
    // Predicated region
    $region2: #{tpu_custom_call.1} parent=1 // pred_check
      _
    $region3: #{tpu_custom_call.1} parent=1 // pred_check_branch
      %13 = sbr.rel (0) target = $region5
    $region4: #{tpu_custom_call.1} parent=1 // pred_region
      %s15 = ssub.s32 256, 256
      %16 = vsyncadd [#allocation3], %s15
      %s17 = sshll.u32 [#allocation2], 4
      %s18 = int_to_ptr.vmem [resolvable:$true] %s17
      %23 = dma.hbm_to_vmem [thread:$0]  %s0, 256, %s18, [#allocation3], 128, 128, 8
    $region5: #{tpu_custom_call.1} parent=1 // pred_fallthru
      _
    // Predicated region
    $region6: #{tpu_custom_call.1} parent=1 // pred_check
      _
    $region7: #{tpu_custom_call.1} parent=1 // pred_check_branch
      %25 = sbr.rel (0) target = $region9
    $region8: #{tpu_custom_call.1} parent=1 // pred_region
      %s27 = ssub.s32 128, 128
      %28 = vsyncadd [#allocation6], %s27
      %s30 = sshll.u32 [#allocation5], 4
      %s31 = int_to_ptr.vmem [resolvable:$true] %s30
      %33 = dma.hbm_to_vmem [thread:$0]  %s1, 128, %s31, [#allocation6]
    $region9: #{tpu_custom_call.1} parent=1 // pred_fallthru
      _
    // Predicated region
    $region10: #{tpu_custom_call.1} parent=1 // pred_check
      _
    $region11: #{tpu_custom_call.1} parent=1 // pred_check_branch
      %35 = sbr.rel (0) target = $region13
    $region12: #{tpu_custom_call.1} parent=1 // pred_region
      %36 = dma.done [#allocation3], 256
    $region13: #{tpu_custom_call.1} parent=1 // pred_fallthru
      _
    // Predicated region
    $region14: #{tpu_custom_call.1} parent=1 // pred_check
      _
    $region15: #{tpu_custom_call.1} parent=1 // pred_check_branch
      %38 = sbr.rel (0) target = $region17
    $region16: #{tpu_custom_call.1} parent=1 // pred_region
      %39 = dma.done [#allocation6], 128
    $region17: #{tpu_custom_call.1} parent=1 // pred_fallthru
      _
    %v40 = vld [vmem:[#allocation2] sm:$0xff]
    %v41 = vld [vmem:[#allocation2 + $0x8] sm:$0xff]
    %v42 = vld [vmem:[#allocation5] sm:$0xff]
    %44 = vrot.lane.b32.xlu0 %v40, 1
    %v45 = vpop.permute.xlu0 %44
    %vm47 = vcmask 7168
    %v48 = vsel %vm47, 0.0, %v45
    %49 = vrot.lane.b32.xlu0 %v40, 127
    %v50 = vpop.permute.xlu0 %49
    %vm52 = vcmask 121856
    %v53 = vsel %vm52, %v50, 0.0
    %vm54 = vcmask 195584
    %v56 = vsel %vm54, %v42, 0
    %58 = vmatprep.subr.mxu0 0.0
    %59 = vmatpush1.msra.mxu0 0.0
    %60 = vmatprep.subr.mxu0 0.0
    %61 = vmatpush1.msra.mxu0 0.0
    %62 = vmatprep.subr.mxu0 0.0
    %63 = vmatpush1.msra.mxu0 0.0
    %64 = vmatprep.subr.mxu0 0.0
    %65 = vmatpush1.msra.mxu0 0.0
    %66 = vmatprep.subr.mxu0 0.0
    %67 = vmatpush1.msra.mxu0 0.0
    %68 = vmatprep.subr.mxu0 0.0
    %69 = vmatpush1.msra.mxu0 0.0
    %70 = vmatprep.subr.mxu0 0.0
    %71 = vmatpush1.msra.mxu0 0.0
    %72 = vmatprep.subr.mxu0 0.0
    %73 = vmatpush1.msra.mxu0 0.0
    %74 = vmatprep.subr.mxu0 0.0
    %75 = vmatpush1.msra.mxu0 0.0
    %76 = vmatprep.subr.mxu0 0.0
    %77 = vmatpush1.msra.mxu0 0.0
    %78 = vmatprep.subr.mxu0 0.0
    %79 = vmatpush1.msra.mxu0 0.0
    %80 = vmatprep.subr.mxu0 0.0
    %81 = vmatpush1.msra.mxu0 0.0
    %82 = vmatprep.subr.mxu0 0.0
    %83 = vmatpush1.msra.mxu0 0.0
    %84 = vmatprep.subr.mxu0 0.0
    %85 = vmatpush1.msra.mxu0 %v53
    %86 = vmatprep.subr.mxu0 0.0
    %87 = vmatpush1.msra.mxu0 %v40
    %88 = vmatprep.subr.mxu0 0.0
    %89 = vmatpush1.msra.mxu0 %v48
    %90 = vmatprep.subr.mxu0 0.0
    %91 = vmatpush2.msra.mxu0 0.0
    %92 = vmatprep.subr.mxu0 0.0
    %93 = vmatpush2.msra.mxu0 0.0
    %94 = vmatprep.subr.mxu0 0.0
    %95 = vmatpush2.msra.mxu0 0.0
    %96 = vmatprep.subr.mxu0 0.0
    %97 = vmatpush2.msra.mxu0 0.0
    %98 = vmatprep.subr.mxu0 0.0
    %99 = vmatpush2.msra.mxu0 0.0
    %100 = vmatprep.subr.mxu0 0.0
    %101 = vmatpush2.msra.mxu0 0.0
    %102 = vmatprep.subr.mxu0 0.0
    %103 = vmatpush2.msra.mxu0 0.0
    %104 = vmatprep.subr.mxu0 0.0
    %105 = vmatpush2.msra.mxu0 0.0
    %106 = vmatprep.subr.mxu0 0.0
    %107 = vmatpush2.msra.mxu0 0.0
    %108 = vmatprep.subr.mxu0 0.0
    %109 = vmatpush2.msra.mxu0 0.0
    %110 = vmatprep.subr.mxu0 0.0
    %111 = vmatpush2.msra.mxu0 0.0
    %112 = vmatprep.subr.mxu0 0.0
    %113 = vmatpush2.msra.mxu0 0.0
    %114 = vmatprep.subr.mxu0 0.0
    %115 = vmatpush2.msra.mxu0 0.0
    %116 = vmatprep.subr.mxu0 0.0
    %117 = vmatpush2.msra.mxu0 0.0
    %118 = vmatprep.subr.mxu0 0.0
    %119 = vmatpush2.msra.mxu0 0.0
    %120 = vmatprep.subr.mxu0 0.0
    %121 = vmatpush2.msra.mxu0 0.0
    %122 = vmatprep.mubr.f32.mxu0 0.0
    %123 = vmatmul.mubr.f32.gmra.mxu0 %v56
    %v124 = vpop.f32.mrf.mxu0
    %v125 = vadd.f32 0.0, %v124
    %v126 = vpop.f32.mrf.mxu0
    %127 = vdwg.mxu0
    %vm128 = vcmask 130048
    %129 = vst.msk [vmem:[#allocation7] sm:$0xff] %vm128, %v125
    %v130 = vsel %vm128, %v125, 0.0
    %131 = vadd.xlane.f32.xlu0 %v130
    %v132 = vpop.xlane.xlu0 %131
    %v133 = vmul.f32 %v125, %v125
    %v134 = vsel %vm128, %v133, 0.0
    %135 = vadd.xlane.f32.xlu0 %v134
    %v136 = vpop.xlane.xlu0 %135
    %v137 = vsel %vm47, %v132, %v136
    %vm138 = vcmask 15360
    %139 = vst.msk [vmem:[%s3] sm:$0xff] %vm138, %v137
    %141 = vrot.lane.b32.xlu0 %v41, 1
    %v142 = vpop.permute.xlu0 %141
    %v144 = vsel %vm47, 0.0, %v142
    %145 = vrot.lane.b32.xlu0 %v41, 127
    %v146 = vpop.permute.xlu0 %145
    %v148 = vsel %vm52, %v146, 0.0
    %149 = vmatprep.subr.mxu0 0.0
    %150 = vmatpush1.msra.mxu0 0.0
    %151 = vmatprep.subr.mxu0 0.0
    %152 = vmatpush1.msra.mxu0 0.0
    %153 = vmatprep.subr.mxu0 0.0
    %154 = vmatpush1.msra.mxu0 0.0
    %155 = vmatprep.subr.mxu0 0.0
    %156 = vmatpush1.msra.mxu0 0.0
    %157 = vmatprep.subr.mxu0 0.0
    %158 = vmatpush1.msra.mxu0 0.0
    %159 = vmatprep.subr.mxu0 0.0
    %160 = vmatpush1.msra.mxu0 0.0
    %161 = vmatprep.subr.mxu0 0.0
    %162 = vmatpush1.msra.mxu0 0.0
    %163 = vmatprep.subr.mxu0 0.0
    %164 = vmatpush1.msra.mxu0 0.0
    %165 = vmatprep.subr.mxu0 0.0
    %166 = vmatpush1.msra.mxu0 0.0
    %167 = vmatprep.subr.mxu0 0.0
    %168 = vmatpush1.msra.mxu0 0.0
    %169 = vmatprep.subr.mxu0 0.0
    %170 = vmatpush1.msra.mxu0 0.0
    %171 = vmatprep.subr.mxu0 0.0
    %172 = vmatpush1.msra.mxu0 0.0
    %173 = vmatprep.subr.mxu0 0.0
    %174 = vmatpush1.msra.mxu0 0.0
    %175 = vmatprep.subr.mxu0 0.0
    %176 = vmatpush1.msra.mxu0 %v148
    %177 = vmatprep.subr.mxu0 0.0
    %178 = vmatpush1.msra.mxu0 %v41
    %179 = vmatprep.subr.mxu0 0.0
    %180 = vmatpush1.msra.mxu0 %v144
    %181 = vmatprep.subr.mxu0 0.0
    %182 = vmatpush2.msra.mxu0 0.0
    %183 = vmatprep.subr.mxu0 0.0
    %184 = vmatpush2.msra.mxu0 0.0
    %185 = vmatprep.subr.mxu0 0.0
    %186 = vmatpush2.msra.mxu0 0.0
    %187 = vmatprep.subr.mxu0 0.0
    %188 = vmatpush2.msra.mxu0 0.0
    %189 = vmatprep.subr.mxu0 0.0
    %190 = vmatpush2.msra.mxu0 0.0
    %191 = vmatprep.subr.mxu0 0.0
    %192 = vmatpush2.msra.mxu0 0.0
    %193 = vmatprep.subr.mxu0 0.0
    %194 = vmatpush2.msra.mxu0 0.0
    %195 = vmatprep.subr.mxu0 0.0
    %196 = vmatpush2.msra.mxu0 0.0
    %197 = vmatprep.subr.mxu0 0.0
    %198 = vmatpush2.msra.mxu0 0.0
    %199 = vmatprep.subr.mxu0 0.0
    %200 = vmatpush2.msra.mxu0 0.0
    %201 = vmatprep.subr.mxu0 0.0
    %202 = vmatpush2.msra.mxu0 0.0
    %203 = vmatprep.subr.mxu0 0.0
    %204 = vmatpush2.msra.mxu0 0.0
    %205 = vmatprep.subr.mxu0 0.0
    %206 = vmatpush2.msra.mxu0 0.0
    %207 = vmatprep.subr.mxu0 0.0
    %208 = vmatpush2.msra.mxu0 0.0
    %209 = vmatprep.subr.mxu0 0.0
    %210 = vmatpush2.msra.mxu0 0.0
    %211 = vmatprep.subr.mxu0 0.0
    %212 = vmatpush2.msra.mxu0 0.0
    %213 = vmatprep.mubr.f32.mxu0 0.0
    %214 = vmatmul.mubr.f32.gmra.mxu0 %v56
    %v215 = vpop.f32.mrf.mxu0
    %v216 = vadd.f32 0.0, %v215
    %v217 = vpop.f32.mrf.mxu0
    %218 = vdwg.mxu0
    %s219 = scalar_lea.vmem [#allocation7], 8
    %220 = vst.msk [vmem:[%s219] sm:$0xff] %vm128, %v216
    %v221 = vsel %vm128, %v216, 0.0
    %222 = vadd.xlane.f32.xlu0 %v221
    %v223 = vpop.xlane.xlu0 %222
    %v224 = vmul.f32 %v216, %v216
    %v225 = vsel %vm128, %v224, 0.0
    %226 = vadd.xlane.f32.xlu0 %v225
    %v227 = vpop.xlane.xlu0 %226
    %v228 = vsel %vm47, %v223, %v227
    %s229 = scalar_lea.vmem %s3, 8
    %230 = vst.msk [vmem:[%s229] sm:$0xff] %vm138, %v228
    // Predicated region
    $region18: #{tpu_custom_call.1} parent=1 // pred_check
      _
    $region19: #{tpu_custom_call.1} parent=1 // pred_check_branch
      %232 = sbr.rel (0) target = $region21
    $region20: #{tpu_custom_call.1} parent=1 // pred_region
      %s234 = ssub.s32 256, 256
      %235 = vsyncadd [#allocation4], %s234
      %s236 = sshll.u32 [#allocation7], 4
      %s237 = int_to_ptr.vmem [resolvable:$true] %s236
      %242 = dma.vmem_to_hbm [thread:$0]  %s237, 256, %s2, [#allocation4], 128, 128, 8
    $region21: #{tpu_custom_call.1} parent=1 // pred_fallthru
      _
    // Predicated region
    $region22: #{tpu_custom_call.1} parent=1 // pred_check
      _
    $region23: #{tpu_custom_call.1} parent=1 // pred_check_branch
      %244 = sbr.rel (0) target = $region25
    $region24: #{tpu_custom_call.1} parent=1 // pred_region
      _
    $region25: #{tpu_custom_call.1} parent=1 // pred_fallthru
      _
    // Predicated region
    $region26: #{tpu_custom_call.1} parent=1 // pred_check
      _
    $region27: #{tpu_custom_call.1} parent=1 // pred_check_branch
      %246 = sbr.rel (0) target = $region29
    $region28: #{tpu_custom_call.1} parent=1 // pred_region
      %247 = dma.done [#allocation4], 256
    $region29: #{tpu_custom_call.1} parent=1 // pred_fallthru
      _
    // Predicated region
    $region30: #{tpu_custom_call.1} parent=1 // pred_check
      _
    $region31: #{tpu_custom_call.1} parent=1 // pred_check_branch
      %249 = sbr.rel (0) target = $region33
    $region32: #{tpu_custom_call.1} parent=1 // pred_region
      _
    $region33: #{tpu_custom_call.1} parent=1 // pred_fallthru
      _
    %250 = vsyncpa [#allocation3], 1
    %251 = vsyncpa [#allocation6], 1
    %252 = vsyncpa [#allocation4], 1

</llo_original>
